<compile_context>
chip_gen: v7x
topology: tpu7x:2x2x1
jax: 0.10.0
libtpu: 0.0.40
codegen_flags: <defaults>
</compile_context>

<pallas_src>
import functools

import jax
import jax.numpy as jnp
import numpy as np
from jax.experimental import pallas as pl
from jax.experimental.pallas import tpu as pltpu


# ----------------------------------------------------------------------------
# Fused NCHW -> NCHW kernel
# ----------------------------------------------------------------------------

def _onehot_dot(x, p, exact_f32):
    """x @ p for a 0/1 selection matrix p (bf16); exact for f32 inputs."""
    if exact_f32:
        # Split f32 into 3 bf16 pieces (24 mantissa bits = 3 x 8).  Each bf16
        # one-hot matmul is exact (products exact in f32, only one nonzero per
        # column), and the f32 recombination is exact for normal-range values,
        # so this is bit-identical data movement.
        hi = x.astype(jnp.bfloat16)
        r1 = x - hi.astype(jnp.float32)
        mid = r1.astype(jnp.bfloat16)
        lo = (r1 - mid.astype(jnp.float32)).astype(jnp.bfloat16)
        y = jnp.dot(hi, p, preferred_element_type=jnp.float32)
        y = y + jnp.dot(mid, p, preferred_element_type=jnp.float32)
        y = y + jnp.dot(lo, p, preferred_element_type=jnp.float32)
        return y
    return jnp.dot(x, p, preferred_element_type=jnp.float32)


def _s2d_fused_kernel(x_ref, p_ref, o_ref, *, bs, W, Wd, G, TC, Hd, exact_f32):
    # x_ref: (1, TC*Hd, bs*W)        rows = (c, dh), lanes = (bh, dw, bw)
    # p_ref: (bs*G, bs*G)            0/1 de-interleave matrix (shared by chunks)
    # o_ref: (1, bs*bs, TC, Hd, Wd)  group g = bh*bs + bw (NCHW channel order)
    pmat = p_ref[...]
    n_chunks = (Wd + G - 1) // G
    for bh in range(bs):                                  # static, tiny loops
        for j in range(n_chunks):
            g = min(G, Wd - j * G)                        # output lanes in chunk
            lo_w = bh * W + j * G * bs
            src = x_ref[0, :, lo_w:lo_w + g * bs]         # (TC*Hd, g*bs)
            p = pmat if g == G else pmat[:g * bs, :]
            y = _onehot_dot(src, p, exact_f32)            # (TC*Hd, bs*G) f32
            for bw in range(bs):
                blk = y[:, bw * G:bw * G + g]             # (TC*Hd, g)
                blk = blk.reshape(TC, Hd, g).astype(o_ref.dtype)
                o_ref[0, bh * bs + bw, :, :, j * G:j * G + g] = blk


def _deinterleave_matrix(bs, G, dtype):
    # P[dw*bs + bw, bw*G + dw] = 1  -> picks every bs-th input lane per group.
    p = np.zeros((bs * G, bs * G), dtype=np.float32)
    for bw in range(bs):
        for dw in range(G):
            p[dw * bs + bw, bw * G + dw] = 1.0
    return jnp.asarray(p, dtype=dtype)


def _pick_channel_tile(C, Hd, bs, W, G, itemsize):
    """Largest channel tile whose double-buffered blocks + matmul temporaries
    stay well inside VMEM on every generation (incl. v7x's 64 MiB)."""
    per_channel = Hd * bs * W * itemsize            # bytes of one input channel
    budget = 20 * 1024 * 1024                       # headroom under 32 MiB limit
    target = 1 * 1024 * 1024                        # ~1 MiB blocks hide step cost
    cands = [tc for tc in range(1, C + 1)
             if C % tc == 0 and ((tc * Hd) % 8 == 0 or tc == C)]
    best = cands[0]
    for tc in cands:
        need = 4 * tc * per_channel + tc * Hd * bs * G * 16   # 2x dbl-buf io + temps
        if need > budget and tc != cands[0]:
            break
        best = tc
        if tc * per_channel >= target:
            break
    return best


def _space_to_depth_fused(x, bs):
    B, C, H, W = x.shape
    Hd, Wd = H // bs, W // bs
    G = min(Wd, 128)
    exact_f32 = bool(x.dtype == jnp.float32)
    p_dtype = jnp.bfloat16 if exact_f32 else x.dtype
    p = _deinterleave_matrix(bs, G, p_dtype)
    TC = _pick_channel_tile(C, Hd, bs, W, G, x.dtype.itemsize)

    # Free (layout-preserving) view: no HBM traffic, no transpose.
    x_rows = x.reshape(B, C * Hd, bs * W)

    kernel = functools.partial(_s2d_fused_kernel, bs=bs, W=W, Wd=Wd, G=G,
                               TC=TC, Hd=Hd, exact_f32=exact_f32)
    out5 = pl.pallas_call(
        kernel,
        out_shape=jax.ShapeDtypeStruct((B, bs * bs, C, Hd, Wd), x.dtype),
        grid_spec=pltpu.PrefetchScalarGridSpec(
            num_scalar_prefetch=0,
            grid=(B, C // TC),
            in_specs=[
                pl.BlockSpec((1, TC * Hd, bs * W), lambda b, ci: (b, ci, 0)),
                pl.BlockSpec((bs * G, bs * G), lambda b, ci: (0, 0)),
            ],
            out_specs=pl.BlockSpec((1, bs * bs, TC, Hd, Wd),
                                   lambda b, ci: (b, 0, ci, 0, 0)),
        ),
        compiler_params=pltpu.CompilerParams(
            dimension_semantics=("parallel", "parallel"),
            vmem_limit_bytes=32 * 1024 * 1024),
    )(x_rows, p)
    # Free merge: (B, bs, bs, C, Hd, Wd) channel order (bh, bw, c) -> K = bs*bs*C.
    return out5.reshape(B, bs * bs * C, Hd, Wd)


# ----------------------------------------------------------------------------
# Known-good fallback (previous kernel; transpose-based layout glue)
# ----------------------------------------------------------------------------

def _s2d_fallback_kernel(x_ref, o_ref, *, block_size, bsC):
    # x_ref: (1, bs, W//bs, bs*C) ; o_ref: (1, 1, W//bs, bs*bs*C)
    for bh in range(block_size):
        o_ref[0, 0, :, bh * bsC:(bh + 1) * bsC] = x_ref[0, bh, :, :]


def _space_to_depth_fallback(x_nchw, bs):
    B, C, H, W = x_nchw.shape
    Hd, Wd = H // bs, W // bs
    bsC = bs * C
    x_nhwc = jnp.transpose(x_nchw, (0, 2, 3, 1))
    x_r = x_nhwc.reshape(B, H, Wd, bsC)
    kernel = functools.partial(_s2d_fallback_kernel, block_size=bs, bsC=bsC)
    out_nhwc = pl.pallas_call(
        kernel,
        out_shape=jax.ShapeDtypeStruct((B, Hd, Wd, bs * bs * C), x_nchw.dtype),
        grid_spec=pltpu.PrefetchScalarGridSpec(
            num_scalar_prefetch=0,
            grid=(B, Hd),
            in_specs=[pl.BlockSpec((1, bs, Wd, bsC), lambda b, dh: (b, dh, 0, 0))],
            out_specs=pl.BlockSpec((1, 1, Wd, bs * bs * C),
                                   lambda b, dh: (b, dh, 0, 0)),
        ),
        compiler_params=pltpu.CompilerParams(
            dimension_semantics=("parallel", "parallel")),
    )(x_r)
    return jnp.transpose(out_nhwc, (0, 3, 1, 2))


# ----------------------------------------------------------------------------
# Public entry point
# ----------------------------------------------------------------------------

def space_to_depth(x, block_size):
    """Pallas TPU implementation of the PyTorch SpaceToDepth module (NCHW)."""
    B, C, H, W = x.shape
    assert H % block_size == 0 and W % block_size == 0, \
        "spatial dims must be divisible by block_size"
    if x.dtype == jnp.float32 or x.dtype == jnp.bfloat16:
        try:
            out = _space_to_depth_fused(x, block_size)
            jax.block_until_ready(out)
            return out
        except Exception:
            # Safety net: if the fused kernel fails to lower on this
            # toolchain/chip, fall back to the previously validated kernel.
            pass
    # TODO(synk): integer / fp8 inputs take the transpose-based path below;
    # extend the fused (MXU-free) path if those dtypes matter.
    return _space_to_depth_fallback(x, block_size)


def _space_to_depth_reference(x_nchw, block_size):
    """Pure-JAX reference reproducing the PyTorch module."""
    B, C, H, W = x_nchw.shape
    bs = block_size
    x = jnp.transpose(x_nchw, (0, 2, 3, 1))                    # NHWC
    x = x.reshape(B, H // bs, bs, W // bs, bs, C)              # (b, dh, bh, dw, bw, c)
    x = jnp.transpose(x, (0, 1, 3, 2, 4, 5))                   # (b, dh, dw, bh, bw, c)
    x = x.reshape(B, H // bs, W // bs, bs * bs * C)
    return jnp.transpose(x, (0, 3, 1, 2))                      # NCHW


if __name__ == "__main__":
    key = jax.random.PRNGKey(0)
    B, C, H, W = 2, 4, 16, 16
    block_size = 2

    x = jax.random.normal(key, (B, C, H, W), dtype=jnp.float32)

    out = space_to_depth(x, block_size)
    out = jax.block_until_ready(out)

    ref = _space_to_depth_reference(x, block_size)
    assert out.shape == (B, C * block_size * block_size, H // block_size, W // block_size)
    np.testing.assert_allclose(np.asarray(out), np.asarray(ref), rtol=0.0, atol=0.0)

    print("KERNEL_OK")
</pallas_src>

<mosaic_0001>
module attributes {stable_mosaic.version = 11 : i64} {
  func.func @_s2d_fused_kernel(%arg0: i32, %arg1: i32, %arg2: memref<1x32x32xf32, #tpu.memory_space<vmem>>, %arg3: memref<16x16xbf16, #tpu.memory_space<vmem>>, %arg4: memref<1x4x4x8x8xf32, #tpu.memory_space<vmem>>) attributes {dimension_semantics = [#tpu.dimension_semantics<parallel>, #tpu.dimension_semantics<parallel>], iteration_bounds = array<i64: 2, 1>, scalar_prefetch = 0 : i64, scratch_operands = 0 : i64, tpu.core_type = #tpu.core_type<tc>, window_params = [{transform_indices = @transform_0, window_bounds = array<i64: 1, 32, 32>}, {pipeline_mode = #tpu.pipeline_mode<synchronous>, transform_indices = @transform_1, window_bounds = array<i64: 16, 16>}, {transform_indices = @transform_2, window_bounds = array<i64: 1, 4, 4, 8, 8>}]} {
    %c0 = arith.constant 0 : index
    %c0_0 = arith.constant 0 : index
    %0 = vector.load %arg3[%c0, %c0_0] : memref<16x16xbf16, #tpu.memory_space<vmem>>, vector<16x16xbf16>
    %c0_1 = arith.constant 0 : index
    %c0_2 = arith.constant 0 : index
    %c0_3 = arith.constant 0 : index
    %1 = vector.load %arg2[%c0_1, %c0_2, %c0_3] : memref<1x32x32xf32, #tpu.memory_space<vmem>>, vector<1x32x16xf32>
    %2 = vector.shape_cast %1 : vector<1x32x16xf32> to vector<32x16xf32>
    %3 = arith.truncf %2 : vector<32x16xf32> to vector<32x16xbf16>
    %4 = arith.extf %3 : vector<32x16xbf16> to vector<32x16xf32>
    %5 = arith.subf %2, %4 : vector<32x16xf32>
    %6 = arith.truncf %5 : vector<32x16xf32> to vector<32x16xbf16>
    %7 = arith.extf %6 : vector<32x16xbf16> to vector<32x16xf32>
    %8 = arith.subf %5, %7 : vector<32x16xf32>
    %9 = arith.truncf %8 : vector<32x16xf32> to vector<32x16xbf16>
    %cst = arith.constant dense<0.000000e+00> : vector<32x16xf32>
    %10 = tpu.matmul %3, %0, %cst {dimension_numbers = #tpu.dot_dimension_numbers<[1], [0], [0], [1], [0, 0, 1, 1], [], []>} : vector<32x16xbf16>, vector<16x16xbf16>, vector<32x16xf32> -> vector<32x16xf32>
    %cst_4 = arith.constant dense<0.000000e+00> : vector<32x16xf32>
    %11 = tpu.matmul %6, %0, %cst_4 {dimension_numbers = #tpu.dot_dimension_numbers<[1], [0], [0], [1], [0, 0, 1, 1], [], []>} : vector<32x16xbf16>, vector<16x16xbf16>, vector<32x16xf32> -> vector<32x16xf32>
    %12 = arith.addf %10, %11 : vector<32x16xf32>
    %cst_5 = arith.constant dense<0.000000e+00> : vector<32x16xf32>
    %13 = tpu.matmul %9, %0, %cst_5 {dimension_numbers = #tpu.dot_dimension_numbers<[1], [0], [0], [1], [0, 0, 1, 1], [], []>} : vector<32x16xbf16>, vector<16x16xbf16>, vector<32x16xf32> -> vector<32x16xf32>
    %14 = arith.addf %12, %13 : vector<32x16xf32>
    %15 = vector.extract_strided_slice %14 {offsets = [0, 0], sizes = [32, 8], strides = [1, 1]} : vector<32x16xf32> to vector<32x8xf32>
    %16 = vector.shape_cast %15 : vector<32x8xf32> to vector<4x8x8xf32>
    %c0_6 = arith.constant 0 : index
    %c0_7 = arith.constant 0 : index
    %c0_8 = arith.constant 0 : index
    %c0_9 = arith.constant 0 : index
    %c0_10 = arith.constant 0 : index
    %17 = vector.load %arg4[%c0_6, %c0_7, %c0_8, %c0_9, %c0_10] : memref<1x4x4x8x8xf32, #tpu.memory_space<vmem>>, vector<1x1x4x8x8xf32>
    %18 = vector.shape_cast %17 : vector<1x1x4x8x8xf32> to vector<4x8x8xf32>
    %19 = vector.shape_cast %16 : vector<4x8x8xf32> to vector<1x1x4x8x8xf32>
    tpu.vector_store %arg4[%c0_6, %c0_7, %c0_8, %c0_9, %c0_10], %19 {strides = array<i32>} : memref<1x4x4x8x8xf32, #tpu.memory_space<vmem>>, vector<1x1x4x8x8xf32>,
    %20 = vector.extract_strided_slice %14 {offsets = [0, 8], sizes = [32, 8], strides = [1, 1]} : vector<32x16xf32> to vector<32x8xf32>
    %21 = vector.shape_cast %20 : vector<32x8xf32> to vector<4x8x8xf32>
    %c0_11 = arith.constant 0 : index
    %c1 = arith.constant 1 : index
    %c0_12 = arith.constant 0 : index
    %c0_13 = arith.constant 0 : index
    %c0_14 = arith.constant 0 : index
    %22 = vector.load %arg4[%c0_11, %c1, %c0_12, %c0_13, %c0_14] : memref<1x4x4x8x8xf32, #tpu.memory_space<vmem>>, vector<1x1x4x8x8xf32>
    %23 = vector.shape_cast %22 : vector<1x1x4x8x8xf32> to vector<4x8x8xf32>
    %24 = vector.shape_cast %21 : vector<4x8x8xf32> to vector<1x1x4x8x8xf32>
    tpu.vector_store %arg4[%c0_11, %c1, %c0_12, %c0_13, %c0_14], %24 {strides = array<i32>} : memref<1x4x4x8x8xf32, #tpu.memory_space<vmem>>, vector<1x1x4x8x8xf32>,
    %c0_15 = arith.constant 0 : index
    %c0_16 = arith.constant 0 : index
    %c16 = arith.constant 16 : index
    %25 = vector.load %arg2[%c0_15, %c0_16, %c16] : memref<1x32x32xf32, #tpu.memory_space<vmem>>, vector<1x32x16xf32>
    %26 = vector.shape_cast %25 : vector<1x32x16xf32> to vector<32x16xf32>
    %27 = arith.truncf %26 : vector<32x16xf32> to vector<32x16xbf16>
    %28 = arith.extf %27 : vector<32x16xbf16> to vector<32x16xf32>
    %29 = arith.subf %26, %28 : vector<32x16xf32>
    %30 = arith.truncf %29 : vector<32x16xf32> to vector<32x16xbf16>
    %31 = arith.extf %30 : vector<32x16xbf16> to vector<32x16xf32>
    %32 = arith.subf %29, %31 : vector<32x16xf32>
    %33 = arith.truncf %32 : vector<32x16xf32> to vector<32x16xbf16>
    %cst_17 = arith.constant dense<0.000000e+00> : vector<32x16xf32>
    %34 = tpu.matmul %27, %0, %cst_17 {dimension_numbers = #tpu.dot_dimension_numbers<[1], [0], [0], [1], [0, 0, 1, 1], [], []>} : vector<32x16xbf16>, vector<16x16xbf16>, vector<32x16xf32> -> vector<32x16xf32>
    %cst_18 = arith.constant dense<0.000000e+00> : vector<32x16xf32>
    %35 = tpu.matmul %30, %0, %cst_18 {dimension_numbers = #tpu.dot_dimension_numbers<[1], [0], [0], [1], [0, 0, 1, 1], [], []>} : vector<32x16xbf16>, vector<16x16xbf16>, vector<32x16xf32> -> vector<32x16xf32>
    %36 = arith.addf %34, %35 : vector<32x16xf32>
    %cst_19 = arith.constant dense<0.000000e+00> : vector<32x16xf32>
    %37 = tpu.matmul %33, %0, %cst_19 {dimension_numbers = #tpu.dot_dimension_numbers<[1], [0], [0], [1], [0, 0, 1, 1], [], []>} : vector<32x16xbf16>, vector<16x16xbf16>, vector<32x16xf32> -> vector<32x16xf32>
    %38 = arith.addf %36, %37 : vector<32x16xf32>
    %39 = vector.extract_strided_slice %38 {offsets = [0, 0], sizes = [32, 8], strides = [1, 1]} : vector<32x16xf32> to vector<32x8xf32>
    %40 = vector.shape_cast %39 : vector<32x8xf32> to vector<4x8x8xf32>
    %c0_20 = arith.constant 0 : index
    %c2 = arith.constant 2 : index
    %c0_21 = arith.constant 0 : index
    %c0_22 = arith.constant 0 : index
    %c0_23 = arith.constant 0 : index
    %41 = vector.load %arg4[%c0_20, %c2, %c0_21, %c0_22, %c0_23] : memref<1x4x4x8x8xf32, #tpu.memory_space<vmem>>, vector<1x1x4x8x8xf32>
    %42 = vector.shape_cast %41 : vector<1x1x4x8x8xf32> to vector<4x8x8xf32>
    %43 = vector.shape_cast %40 : vector<4x8x8xf32> to vector<1x1x4x8x8xf32>
    tpu.vector_store %arg4[%c0_20, %c2, %c0_21, %c0_22, %c0_23], %43 {strides = array<i32>} : memref<1x4x4x8x8xf32, #tpu.memory_space<vmem>>, vector<1x1x4x8x8xf32>,
    %44 = vector.extract_strided_slice %38 {offsets = [0, 8], sizes = [32, 8], strides = [1, 1]} : vector<32x16xf32> to vector<32x8xf32>
    %45 = vector.shape_cast %44 : vector<32x8xf32> to vector<4x8x8xf32>
    %c0_24 = arith.constant 0 : index
    %c3 = arith.constant 3 : index
    %c0_25 = arith.constant 0 : index
    %c0_26 = arith.constant 0 : index
    %c0_27 = arith.constant 0 : index
    %46 = vector.load %arg4[%c0_24, %c3, %c0_25, %c0_26, %c0_27] : memref<1x4x4x8x8xf32, #tpu.memory_space<vmem>>, vector<1x1x4x8x8xf32>
    %47 = vector.shape_cast %46 : vector<1x1x4x8x8xf32> to vector<4x8x8xf32>
    %48 = vector.shape_cast %45 : vector<4x8x8xf32> to vector<1x1x4x8x8xf32>
    tpu.vector_store %arg4[%c0_24, %c3, %c0_25, %c0_26, %c0_27], %48 {strides = array<i32>} : memref<1x4x4x8x8xf32, #tpu.memory_space<vmem>>, vector<1x1x4x8x8xf32>,
    return
  }
  func.func @transform_0(%arg0: i32, %arg1: i32) -> (i32, i32, i32) {
    %c0_i32 = arith.constant 0 : i32
    %c0_i32_0 = arith.constant 0 : i32
    return %arg0, %arg1, %c0_i32 : i32, i32, i32
  }
  func.func @transform_1(%arg0: i32, %arg1: i32) -> (i32, i32) {
    %c0_i32 = arith.constant 0 : i32
    %c0_i32_0 = arith.constant 0 : i32
    %c0_i32_1 = arith.constant 0 : i32
    return %c0_i32, %c0_i32_0 : i32, i32
  }
  func.func @transform_2(%arg0: i32, %arg1: i32) -> (i32, i32, i32, i32, i32) {
    %c0_i32 = arith.constant 0 : i32
    %c0_i32_0 = arith.constant 0 : i32
    %c0_i32_1 = arith.constant 0 : i32
    %c0_i32_2 = arith.constant 0 : i32
    return %arg0, %c0_i32, %arg1, %c0_i32_0, %c0_i32_1 : i32, i32, i32, i32, i32
  }
}

module attributes {stable_mosaic.version = 11 : i64} {
  func.func @_s2d_fallback_kernel(%arg0: i32, %arg1: i32, %arg2: memref<1x2x8x8xf32, #tpu.memory_space<vmem>>, %arg3: memref<1x1x8x16xf32, #tpu.memory_space<vmem>>) attributes {dimension_semantics = [#tpu.dimension_semantics<parallel>, #tpu.dimension_semantics<parallel>], iteration_bounds = array<i64: 2, 8>, scalar_prefetch = 0 : i64, scratch_operands = 0 : i64, tpu.core_type = #tpu.core_type<tc>, window_params = [{transform_indices = @transform_0, window_bounds = array<i64: 1, 2, 8, 8>}, {transform_indices = @transform_1, window_bounds = array<i64: 1, 1, 8, 16>}]} {
    %c0 = arith.constant 0 : index
    %c0_0 = arith.constant 0 : index
    %c0_1 = arith.constant 0 : index
    %c0_2 = arith.constant 0 : index
    %0 = vector.load %arg2[%c0, %c0_0, %c0_1, %c0_2] : memref<1x2x8x8xf32, #tpu.memory_space<vmem>>, vector<1x1x8x8xf32>
    %1 = vector.shape_cast %0 : vector<1x1x8x8xf32> to vector<8x8xf32>
    %c0_3 = arith.constant 0 : index
    %c0_4 = arith.constant 0 : index
    %c0_5 = arith.constant 0 : index
    %c0_6 = arith.constant 0 : index
    %2 = vector.load %arg3[%c0_3, %c0_4, %c0_5, %c0_6] : memref<1x1x8x16xf32, #tpu.memory_space<vmem>>, vector<1x1x8x8xf32>
    %3 = vector.shape_cast %2 : vector<1x1x8x8xf32> to vector<8x8xf32>
    %4 = vector.shape_cast %1 : vector<8x8xf32> to vector<1x1x8x8xf32>
    tpu.vector_store %arg3[%c0_3, %c0_4, %c0_5, %c0_6], %4 {strides = array<i32>} : memref<1x1x8x16xf32, #tpu.memory_space<vmem>>, vector<1x1x8x8xf32>,
    %c0_7 = arith.constant 0 : index
    %c1 = arith.constant 1 : index
    %c0_8 = arith.constant 0 : index
    %c0_9 = arith.constant 0 : index
    %5 = vector.load %arg2[%c0_7, %c1, %c0_8, %c0_9] : memref<1x2x8x8xf32, #tpu.memory_space<vmem>>, vector<1x1x8x8xf32>
    %6 = vector.shape_cast %5 : vector<1x1x8x8xf32> to vector<8x8xf32>
    %c0_10 = arith.constant 0 : index
    %c0_11 = arith.constant 0 : index
    %c0_12 = arith.constant 0 : index
    %c8 = arith.constant 8 : index
    %7 = vector.load %arg3[%c0_10, %c0_11, %c0_12, %c8] : memref<1x1x8x16xf32, #tpu.memory_space<vmem>>, vector<1x1x8x8xf32>
    %8 = vector.shape_cast %7 : vector<1x1x8x8xf32> to vector<8x8xf32>
    %9 = vector.shape_cast %6 : vector<8x8xf32> to vector<1x1x8x8xf32>
    tpu.vector_store %arg3[%c0_10, %c0_11, %c0_12, %c8], %9 {strides = array<i32>} : memref<1x1x8x16xf32, #tpu.memory_space<vmem>>, vector<1x1x8x8xf32>,
    return
  }
  func.func @transform_0(%arg0: i32, %arg1: i32) -> (i32, i32, i32, i32) {
    %c0_i32 = arith.constant 0 : i32
    %c0_i32_0 = arith.constant 0 : i32
    %c0_i32_1 = arith.constant 0 : i32
    return %arg0, %arg1, %c0_i32, %c0_i32_0 : i32, i32, i32, i32
  }
  func.func @transform_1(%arg0: i32, %arg1: i32) -> (i32, i32, i32, i32) {
    %c0_i32 = arith.constant 0 : i32
    %c0_i32_0 = arith.constant 0 : i32
    %c0_i32_1 = arith.constant 0 : i32
    return %arg0, %arg1, %c0_i32, %c0_i32_0 : i32, i32, i32, i32
  }
}

</mosaic_0001>

<llo_original>
// kernel: tpu_custom_call.1
$region0: #{tpu_custom_call.1}
  #allocation0 [shape = 'u32[]', space=smem, size = 0x4, offset = 0x4, fixed_abs, tag = 'smem constant byte address 0x4 - core index']
  #allocation1 [shape = 'u32[144,128]{1,0:T(1,128)}', space=vmem, size = 0x12000, scoped, tag = 'internal scratch']
  %s0 = inlined_call_operand.hbm [shape: f32[2,32,32], index: 0, kind: input, shape index: {}]
  %s1 = inlined_call_operand.hbm [shape: bf16[16,16], index: 1, kind: input, shape index: {}]
  %s2 = inlined_call_operand.hbm [shape: f32[2,4,4,8,8], index: 2, kind: output, shape index: {}]
  %s3 = sld [smem:[#allocation0]]
  $region49: #{tpu_custom_call.1} parent=0
    _
  %s5 = ssub.s32 1, %s3
  %s6 = scalar_select 0, %s5, %s3
  $region1: #{tpu_custom_call.1} parent=0
    #allocation2 [shape = 'u8[32768]{0}', space=vmem, size = 0x8000, scoped, tag = 'input window, operand 0']
    #allocation3 [shape = 's32[2]{0}', space=sflag, size = 0x8, scoped, tag = 'scoped memory for tpu_custom_call.1']
    #allocation4 [shape = 's32[2]{0}', space=sflag, size = 0x8, scoped, tag = 'scoped memory for tpu_custom_call.1']
    #allocation5 [shape = 'u8[4096]{0}', space=vmem, size = 0x1000, scoped, tag = 'input window, operand 1, single buffered']
    #allocation6 [shape = 's32[1]{0}', space=sflag, size = 0x4, scoped, tag = 'scoped memory for tpu_custom_call.1']
    #allocation7 [shape = 'u8[131072]{0}', space=vmem, size = 0x20000, scoped, tag = 'output window, operand 0']
    %7 = vsyncpa [#allocation3], 0
    %s8 = scalar_lea.sflag [#allocation3], 1
    %9 = vsyncpa %s8, 0
    %10 = vsyncpa [#allocation6], 0
    %11 = vsyncpa [#allocation4], 0
    %s12 = scalar_lea.sflag [#allocation4], 1
    %13 = vsyncpa %s12, 0
    loop: start=0, step=1, limit=4
    $region2: #{tpu_custom_call.1} parent=1 // loop_pre_header
      _
    $region3: #{tpu_custom_call.1} parent=1 // loop_header
      %s15 = sphi 0, %s19
      %p16 = scmp.ge.s32.totalorder %s15, 4
      %s22 = sphi 0, %s34
      %s23 = sphi 0, %s30
      %s24 = sphi 0, %s22
      %s25 = sphi 0, %s23
      %s26 = sphi 0, %s24
      %s27 = sphi 0, %s25
      %s39 = sphi 0, %s41
      %s42 = sphi 0, %s39
      %s43 = sphi 0, %s42
      %s59 = sphi 0, %s43
      %s63 = sphi 0, %s63
      %s65 = sphi 0, %s63
      %s66 = sphi 0, %s65
      %s80 = sphi 0, %s66
      %s88 = sphi 0, %s90
      %s91 = sphi 0, %s88
      %s92 = sphi 0, %s91
      %s108 = sphi 0, %s92
    $region4: #{tpu_custom_call.1} parent=1 // loop_header_branch
      %18 = sbr.rel (%p16) target = $region8
    $region5: #{tpu_custom_call.1} parent=1 // loop_body
      %s20 = ssub.s32 %s15, 1
      %s21 = ssub.s32 %s15, 2
      %s28 = sadd.s32 1, %s23
      %p29 = scmp.ge.s32.totalorder %s28, 1
      %s30 = scalar_select %p29, 0, %s28
      %s31 = sadd.s32 1, %s22
      %s32 = scalar_select %p29, %s31, %s22
      %p33 = scmp.ge.s32.totalorder %s32, 2
      %s34 = scalar_select %p33, 0, %s32
      %s35 = ssub.s32 %s22, %s34
      %s36 = ssub.s32 %s23, %s30
      %s37 = sor.u32 %s35, %s36
      %p38 = scmp.eq.s32.totalorder %s37, 0
      %s40 = sadd.s32 %s39, 1
      %s41 = scalar_select %p38, %s39, %s40
      %p44 = pneg %p38
      %p45 = scmp.eq.s32.totalorder %s15, 1
      %p46 = por %p44, %p45
      %p47 = scmp.ne.s32.totalorder %s39, %s42
      %p48 = scmp.eq.s32.totalorder %s15, 0
      %p49 = por %p47, %p48
      %p50 = scmp.ne.s32.totalorder %s39, %s42
      %p51 = scmp.eq.s32.totalorder %s20, 1
      %p52 = por %p50, %p51
      %p53 = scmp.ne.s32.totalorder %s42, %s43
      %p54 = scmp.eq.s32.totalorder %s20, 0
      %p55 = por %p53, %p54
      %p56 = scmp.ne.s32.totalorder %s42, %s43
      %p57 = scmp.eq.s32.totalorder %s21, 1
      %p58 = por %p56, %p57
      %p60 = scmp.ne.s32.totalorder %s43, %s59
      %p61 = scmp.eq.s32.totalorder %s21, 0
      %p62 = por %p60, %p61
      %s64 = sadd.s32 %s63, 1
      %p67 = scmp.eq.s32.totalorder %s15, 1
      %p68 = scmp.ne.s32.totalorder %s63, %s65
      %p69 = scmp.eq.s32.totalorder %s15, 0
      %p70 = por %p68, %p69
      %p71 = scmp.ne.s32.totalorder %s63, %s65
      %p72 = scmp.eq.s32.totalorder %s20, 1
      %p73 = por %p71, %p72
      %p74 = scmp.ne.s32.totalorder %s65, %s66
      %p75 = scmp.eq.s32.totalorder %s20, 0
      %p76 = por %p74, %p75
      %p77 = scmp.ne.s32.totalorder %s65, %s66
      %p78 = scmp.eq.s32.totalorder %s21, 1
      %p79 = por %p77, %p78
      %p81 = scmp.ne.s32.totalorder %s66, %s80
      %p82 = scmp.eq.s32.totalorder %s21, 0
      %p83 = por %p81, %p82
      %s84 = ssub.s32 %s22, %s34
      %s85 = ssub.s32 %s23, %s30
      %s86 = sor.u32 %s84, %s85
      %p87 = scmp.eq.s32.totalorder %s86, 0
      %s89 = sadd.s32 %s88, 1
      %s90 = scalar_select %p87, %s88, %s89
      %p93 = pneg %p87
      %p94 = scmp.eq.s32.totalorder %s15, 1
      %p95 = por %p93, %p94
      %p96 = scmp.ne.s32.totalorder %s88, %s91
      %p97 = scmp.eq.s32.totalorder %s15, 0
      %p98 = por %p96, %p97
      %p99 = scmp.ne.s32.totalorder %s88, %s91
      %p100 = scmp.eq.s32.totalorder %s20, 1
      %p101 = por %p99, %p100
      %p102 = scmp.ne.s32.totalorder %s91, %s92
      %p103 = scmp.eq.s32.totalorder %s20, 0
      %p104 = por %p102, %p103
      %p105 = scmp.ne.s32.totalorder %s91, %s92
      %p106 = scmp.eq.s32.totalorder %s21, 1
      %p107 = por %p105, %p106
      %p109 = scmp.ne.s32.totalorder %s92, %s108
      %p110 = scmp.eq.s32.totalorder %s21, 0
      %p111 = por %p109, %p110
      %p112 = scmp.le.s32.totalorder 1, %s15
      %p113 = scmp.lt.s32.totalorder %s15, 3
      %p114 = pnand %p112, %p113
      %p115 = pneg %p114
      // Predicated region
      $region9: #{tpu_custom_call.1} parent=5 // pred_check
        _
      $region10: #{tpu_custom_call.1} parent=5 // pred_check_branch
        %117 = sbr.rel (%p114) target = $region12
      $region11: #{tpu_custom_call.1} parent=5 // pred_region
        %s118 = ssub.s32 %s15, 1
        // Predicated region
        $region13: #{tpu_custom_call.1} parent=11 // pred_check
          %p119 = pneg %p76
        $region14: #{tpu_custom_call.1} parent=11 // pred_check_branch
          %121 = sbr.rel (%p119) target = $region16
        $region15: #{tpu_custom_call.1} parent=11 // pred_region
          %s123 = ssub.s32 128, 128
          %124 = vsyncadd [#allocation6], %s123
          %s125 = sshll.u32 [#allocation5], 4
          %s126 = int_to_ptr.vmem [resolvable:$true] %s125
          %131 = dma.hbm_to_vmem [thread:$0]  %s1, 128, %s126, [#allocation6], 64, 64, 4
        $region16: #{tpu_custom_call.1} parent=11 // pred_fallthru
          _
      $region12: #{tpu_custom_call.1} parent=5 // pred_fallthru
        _
      %p132 = scmp.lt.s32.totalorder %s15, 2
      // Predicated region
      $region17: #{tpu_custom_call.1} parent=5 // pred_check
        %p133 = pneg %p132
      $region18: #{tpu_custom_call.1} parent=5 // pred_check_branch
        %135 = sbr.rel (%p133) target = $region20
      $region19: #{tpu_custom_call.1} parent=5 // pred_region
        // Predicated region
        $region21: #{tpu_custom_call.1} parent=19 // pred_check
          %p136 = pneg %p49
        $region22: #{tpu_custom_call.1} parent=19 // pred_check_branch
          %138 = sbr.rel (%p136) target = $region24
        $region23: #{tpu_custom_call.1} parent=19 // pred_region
          %s139 = sand.u32 %s39, 1
          %s140 = scalar_lea.sflag [#allocation3], %s139
          %s141 = sand.u32 %s39, 1
          %s142 = smul.addr %s141, 32
          %s143 = scalar_lea.vmem [#allocation2], %s142
          %s144 = smul.u32 4, %s23
          %s146 = ssub.s32 512, 512
          %147 = vsyncadd %s140, %s146
          %s148 = smul.addr %s22, 4
          %s149 = sadd.s32 %s144, %s148
          %s150 = smul.addr %s149, 128
          %s151 = scalar_lea.hbm %s0, %s150
          %s152 = sshll.u32 %s143, 4
          %s153 = int_to_ptr.vmem [resolvable:$true] %s152
          %158 = dma.hbm_to_vmem [thread:$0]  %s151, 512, %s153, %s140, 128, 128, 8
        $region24: #{tpu_custom_call.1} parent=19 // pred_fallthru
          _
      $region20: #{tpu_custom_call.1} parent=5 // pred_fallthru
        _
      %p159 = scmp.le.s32.totalorder 1, %s15
      %p160 = scmp.lt.s32.totalorder %s15, 3
      %p161 = pnand %p159, %p160
      %p162 = pneg %p161
      // Predicated region
      $region25: #{tpu_custom_call.1} parent=5 // pred_check
        _
      $region26: #{tpu_custom_call.1} parent=5 // pred_check_branch
        %164 = sbr.rel (%p161) target = $region28
      $region27: #{tpu_custom_call.1} parent=5 // pred_region
        %s165 = ssub.s32 %s15, 1
        %s166 = sand.u32 %s42, 1
        %s167 = scalar_lea.sflag [#allocation3], %s166
        %s168 = sand.u32 %s42, 1
        %s169 = smul.addr %s168, 32
        %s170 = scalar_lea.vmem [#allocation2], %s169
        // Predicated region
        $region29: #{tpu_custom_call.1} parent=27 // pred_check
          %p171 = pneg %p55
        $region30: #{tpu_custom_call.1} parent=27 // pred_check_branch
          %173 = sbr.rel (%p171) target = $region32
        $region31: #{tpu_custom_call.1} parent=27 // pred_region
          %174 = dma.done %s167, 512
        $region32: #{tpu_custom_call.1} parent=27 // pred_fallthru
          _
        // Predicated region
        $region33: #{tpu_custom_call.1} parent=27 // pred_check
          %p175 = pneg %p76
        $region34: #{tpu_custom_call.1} parent=27 // pred_check_branch
          %177 = sbr.rel (%p175) target = $region36
        $region35: #{tpu_custom_call.1} parent=27 // pred_region
          %178 = dma.done [#allocation6], 128
        $region36: #{tpu_custom_call.1} parent=27 // pred_fallthru
          _
        %s179 = sand.u32 %s42, 1
        %s180 = scalar_lea.sflag [#allocation3], %s179
        %s181 = sand.u32 %s42, 1
        %s182 = smul.addr %s181, 32
        %s183 = scalar_lea.vmem [#allocation2], %s182
        %p184 = pneg %p55
        %p185 = pneg %p52
        %p186 = pneg %p76
        %p187 = pneg %p73
        %p188 = pneg %p104
        %p189 = pneg %p101
        %s190 = sand.u32 %s91, 1
        %s191 = scalar_lea.sflag [#allocation4], %s190
        %s192 = sand.u32 %s91, 1
        %s193 = smul.addr %s192, 128
        %s194 = scalar_lea.vmem [#allocation7], %s193
        %s195 = smul.u32 4, %s25
        %s196 = smul.u32 4, %s25
        %v198 = vld [vmem:[#allocation5] sm:$0xf]
        %v199 = vld [vmem:[#allocation5 + $0x4] sm:$0xf]
        %v200 = vld [vmem:[%s170] sm:$0xff]
        %v201 = vld [vmem:[%s170 + $0x8] sm:$0xff]
        %v202 = vld [vmem:[%s170 + $0x10] sm:$0xff]
        %v203 = vld [vmem:[%s170 + $0x18] sm:$0xff]
        %v204 = vpack.c.bf16 %v201, %v200
        %v205 = vpack.c.bf16 %v203, %v202
        %v206 = vunpack.c.l.bf16 %v204
        %v207 = vunpack.c.h.bf16 %v204
        %v208 = vunpack.c.l.bf16 %v205
        %v209 = vunpack.c.h.bf16 %v205
        %v210 = vsub.f32 %v200, %v206
        %v211 = vsub.f32 %v201, %v207
        %v212 = vsub.f32 %v202, %v208
        %v213 = vsub.f32 %v203, %v209
        %v214 = vpack.c.bf16 %v211, %v210
        %v215 = vpack.c.bf16 %v213, %v212
        %v216 = vunpack.c.l.bf16 %v214
        %v217 = vunpack.c.h.bf16 %v214
        %v218 = vunpack.c.l.bf16 %v215
        %v219 = vunpack.c.h.bf16 %v215
        %v220 = vsub.f32 %v210, %v216
        %v221 = vsub.f32 %v211, %v217
        %v222 = vsub.f32 %v212, %v218
        %v223 = vsub.f32 %v213, %v219
        %v224 = vpack.c.bf16 %v221, %v220
        %v225 = vpack.c.bf16 %v223, %v222
        %v228 = vunpack.c.l.b16 %v198
        %v229 = vunpack.c.l.b16 %v199
        %v230 = vpack.c.b16 %v229, %v228
        %vm232 = vcmask 130048
        %v234 = vsel %vm232, %v214, 0
        %v237 = vsel %vm232, %v215, 0
        %239 = vmatprep.subr.bf16.mxu0 0
        %240 = vmatpush1.bf16.msra.mxu0 %v230
        %241 = vmatprep.subr.bf16.mxu0 0
        %242 = vmatpush1.bf16.msra.mxu0 0
        %243 = vmatprep.subr.bf16.mxu0 0
        %244 = vmatpush1.bf16.msra.mxu0 0
        %245 = vmatprep.subr.bf16.mxu0 0
        %246 = vmatpush1.bf16.msra.mxu0 0
        %247 = vmatprep.subr.bf16.mxu0 0
        %248 = vmatpush1.bf16.msra.mxu0 0
        %249 = vmatprep.subr.bf16.mxu0 0
        %250 = vmatpush1.bf16.msra.mxu0 0
        %251 = vmatprep.subr.bf16.mxu0 0
        %252 = vmatpush1.bf16.msra.mxu0 0
        %253 = vmatprep.subr.bf16.mxu0 0
        %254 = vmatpush1.bf16.msra.mxu0 0
        %255 = vmatprep.subr.bf16.mxu0 0
        %256 = vmatpush1.bf16.msra.mxu0 0
        %257 = vmatprep.subr.bf16.mxu0 0
        %258 = vmatpush1.bf16.msra.mxu0 0
        %259 = vmatprep.subr.bf16.mxu0 0
        %260 = vmatpush1.bf16.msra.mxu0 0
        %261 = vmatprep.subr.bf16.mxu0 0
        %262 = vmatpush1.bf16.msra.mxu0 0
        %263 = vmatprep.subr.bf16.mxu0 0
        %264 = vmatpush1.bf16.msra.mxu0 0
        %265 = vmatprep.subr.bf16.mxu0 0
        %266 = vmatpush1.bf16.msra.mxu0 0
        %267 = vmatprep.subr.bf16.mxu0 0
        %268 = vmatpush1.bf16.msra.mxu0 0
        %269 = vmatprep.subr.bf16.mxu0 0
        %270 = vmatpush1.bf16.msra.mxu0 0
        %271 = vmatprep.mubr.bf16.mxu0 0
        %272 = vmatmul.mubr.bf16.gmra.mrb[0].mxu0 %v234
        %v273 = vpop.f32.mrb[0].mxu0
        %v274 = vadd.f32 0.0, %v273
        %v275 = vpop.f32.mrb[0].mxu0
        %v276 = vpop.f32.mrb[0].mxu0
        %v277 = vadd.f32 0.0, %v276
        %v278 = vpop.f32.mrb[0].mxu0
        %279 = vmatprep.mubr.bf16.mxu0 0
        %280 = vmatmul.mubr.bf16.gmra.mrb[0].mxu0 %v237
        %v281 = vpop.f32.mrb[0].mxu0
        %v282 = vadd.f32 0.0, %v281
        %v283 = vpop.f32.mrb[0].mxu0
        %v284 = vpop.f32.mrb[0].mxu0
        %v285 = vadd.f32 0.0, %v284
        %v286 = vpop.f32.mrb[0].mxu0
        %287 = vdwg.mxu0
        %v289 = vsel %vm232, %v204, 0
        %v292 = vsel %vm232, %v205, 0
        %294 = vmatprep.subr.bf16.mxu0 0
        %295 = vmatpush1.bf16.msra.mxu0 %v230
        %296 = vmatprep.subr.bf16.mxu0 0
        %297 = vmatpush1.bf16.msra.mxu0 0
        %298 = vmatprep.subr.bf16.mxu0 0
        %299 = vmatpush1.bf16.msra.mxu0 0
        %300 = vmatprep.subr.bf16.mxu0 0
        %301 = vmatpush1.bf16.msra.mxu0 0
        %302 = vmatprep.subr.bf16.mxu0 0
        %303 = vmatpush1.bf16.msra.mxu0 0
        %304 = vmatprep.subr.bf16.mxu0 0
        %305 = vmatpush1.bf16.msra.mxu0 0
        %306 = vmatprep.subr.bf16.mxu0 0
        %307 = vmatpush1.bf16.msra.mxu0 0
        %308 = vmatprep.subr.bf16.mxu0 0
        %309 = vmatpush1.bf16.msra.mxu0 0
        %310 = vmatprep.subr.bf16.mxu0 0
        %311 = vmatpush1.bf16.msra.mxu0 0
        %312 = vmatprep.subr.bf16.mxu0 0
        %313 = vmatpush1.bf16.msra.mxu0 0
        %314 = vmatprep.subr.bf16.mxu0 0
        %315 = vmatpush1.bf16.msra.mxu0 0
        %316 = vmatprep.subr.bf16.mxu0 0
        %317 = vmatpush1.bf16.msra.mxu0 0
        %318 = vmatprep.subr.bf16.mxu0 0
        %319 = vmatpush1.bf16.msra.mxu0 0
        %320 = vmatprep.subr.bf16.mxu0 0
        %321 = vmatpush1.bf16.msra.mxu0 0
        %322 = vmatprep.subr.bf16.mxu0 0
        %323 = vmatpush1.bf16.msra.mxu0 0
        %324 = vmatprep.subr.bf16.mxu0 0
        %325 = vmatpush1.bf16.msra.mxu0 0
        %326 = vmatprep.mubr.bf16.mxu0 0
        %327 = vmatmul.mubr.bf16.gmra.mrb[0].mxu0 %v289
        %v328 = vpop.f32.mrb[0].mxu0
        %v329 = vadd.f32 %v274, %v328
        %v330 = vpop.f32.mrb[0].mxu0
        %v331 = vpop.f32.mrb[0].mxu0
        %v332 = vadd.f32 %v277, %v331
        %v333 = vpop.f32.mrb[0].mxu0
        %334 = vmatprep.mubr.bf16.mxu0 0
        %335 = vmatmul.mubr.bf16.gmra.mrb[0].mxu0 %v292
        %v336 = vpop.f32.mrb[0].mxu0
        %v337 = vadd.f32 %v282, %v336
        %v338 = vpop.f32.mrb[0].mxu0
        %v339 = vpop.f32.mrb[0].mxu0
        %v340 = vadd.f32 %v285, %v339
        %v341 = vpop.f32.mrb[0].mxu0
        %342 = vdwg.mxu0
        %v344 = vsel %vm232, %v224, 0
        %v347 = vsel %vm232, %v225, 0
        %349 = vmatprep.subr.bf16.mxu0 0
        %350 = vmatpush1.bf16.msra.mxu0 %v230
        %351 = vmatprep.subr.bf16.mxu0 0
        %352 = vmatpush1.bf16.msra.mxu0 0
        %353 = vmatprep.subr.bf16.mxu0 0
        %354 = vmatpush1.bf16.msra.mxu0 0
        %355 = vmatprep.subr.bf16.mxu0 0
        %356 = vmatpush1.bf16.msra.mxu0 0
        %357 = vmatprep.subr.bf16.mxu0 0
        %358 = vmatpush1.bf16.msra.mxu0 0
        %359 = vmatprep.subr.bf16.mxu0 0
        %360 = vmatpush1.bf16.msra.mxu0 0
        %361 = vmatprep.subr.bf16.mxu0 0
        %362 = vmatpush1.bf16.msra.mxu0 0
        %363 = vmatprep.subr.bf16.mxu0 0
        %364 = vmatpush1.bf16.msra.mxu0 0
        %365 = vmatprep.subr.bf16.mxu0 0
        %366 = vmatpush1.bf16.msra.mxu0 0
        %367 = vmatprep.subr.bf16.mxu0 0
        %368 = vmatpush1.bf16.msra.mxu0 0
        %369 = vmatprep.subr.bf16.mxu0 0
        %370 = vmatpush1.bf16.msra.mxu0 0
        %371 = vmatprep.subr.bf16.mxu0 0
        %372 = vmatpush1.bf16.msra.mxu0 0
        %373 = vmatprep.subr.bf16.mxu0 0
        %374 = vmatpush1.bf16.msra.mxu0 0
        %375 = vmatprep.subr.bf16.mxu0 0
        %376 = vmatpush1.bf16.msra.mxu0 0
        %377 = vmatprep.subr.bf16.mxu0 0
        %378 = vmatpush1.bf16.msra.mxu0 0
        %379 = vmatprep.subr.bf16.mxu0 0
        %380 = vmatpush1.bf16.msra.mxu0 0
        %381 = vmatprep.mubr.bf16.mxu0 0
        %382 = vmatmul.mubr.bf16.gmra.mrb[0].mxu0 %v344
        %v383 = vpop.f32.mrb[0].mxu0
        %v384 = vadd.f32 0.0, %v383
        %v385 = vpop.f32.mrb[0].mxu0
        %v386 = vpop.f32.mrb[0].mxu0
        %v387 = vadd.f32 0.0, %v386
        %v388 = vpop.f32.mrb[0].mxu0
        %389 = vmatprep.mubr.bf16.mxu0 0
        %390 = vmatmul.mubr.bf16.gmra.mrb[0].mxu0 %v347
        %v391 = vpop.f32.mrb[0].mxu0
        %v392 = vadd.f32 0.0, %v391
        %v393 = vpop.f32.mrb[0].mxu0
        %v394 = vpop.f32.mrb[0].mxu0
        %v395 = vadd.f32 0.0, %v394
        %v396 = vpop.f32.mrb[0].mxu0
        %397 = vdwg.mxu0
        %v398 = vadd.f32 %v329, %v384
        %v399 = vadd.f32 %v332, %v387
        %v400 = vadd.f32 %v337, %v392
        %v401 = vadd.f32 %v340, %v395
        %vm402 = vcmask 64512
        %403 = vst.msk [vmem:[%s194] sm:$0xff] %vm402, %v398
        %404 = vst.msk [vmem:[%s194 + $0x8] sm:$0xff] %vm402, %v399
        %405 = vst.msk [vmem:[%s194 + $0x10] sm:$0xff] %vm402, %v400
        %406 = vst.msk [vmem:[%s194 + $0x18] sm:$0xff] %vm402, %v401
        %411 = vrot.lane.b32.xlu0 %v398, 120
        %v412 = vpop.permute.xlu0 %411
        %413 = vrot.lane.b32.xlu0 %v399, 120
        %v414 = vpop.permute.xlu0 %413
        %415 = vrot.lane.b32.xlu0 %v400, 120
        %v416 = vpop.permute.xlu0 %415
        %417 = vrot.lane.b32.xlu0 %v401, 120
        %v418 = vpop.permute.xlu0 %417
        %s423 = scalar_lea.vmem %s194, 32 [#allocation7]
        %424 = vst.msk [vmem:[%s423] sm:$0xff] %vm402, %v412
        %425 = vst.msk [vmem:[%s423 + $0x8] sm:$0xff] %vm402, %v414
        %426 = vst.msk [vmem:[%s423 + $0x10] sm:$0xff] %vm402, %v416
        %427 = vst.msk [vmem:[%s423 + $0x18] sm:$0xff] %vm402, %v418
        %v428 = vld [vmem:[%s170] sm:$0xff]
        %v429 = vld [vmem:[%s170 + $0x8] sm:$0xff]
        %v430 = vld [vmem:[%s170 + $0x10] sm:$0xff]
        %v431 = vld [vmem:[%s170 + $0x18] sm:$0xff]
        %v432 = vpack.c.bf16 %v429, %v428
        %v433 = vpack.c.bf16 %v431, %v430
        %v434 = vunpack.c.l.bf16 %v432
        %v435 = vunpack.c.h.bf16 %v432
        %v436 = vunpack.c.l.bf16 %v433
        %v437 = vunpack.c.h.bf16 %v433
        %v438 = vsub.f32 %v428, %v434
        %v439 = vsub.f32 %v429, %v435
        %v440 = vsub.f32 %v430, %v436
        %v441 = vsub.f32 %v431, %v437
        %v442 = vpack.c.bf16 %v439, %v438
        %v443 = vpack.c.bf16 %v441, %v440
        %v444 = vunpack.c.l.bf16 %v442
        %v445 = vunpack.c.h.bf16 %v442
        %v446 = vunpack.c.l.bf16 %v443
        %v447 = vunpack.c.h.bf16 %v443
        %v448 = vsub.f32 %v438, %v444
        %v449 = vsub.f32 %v439, %v445
        %v450 = vsub.f32 %v440, %v446
        %v451 = vsub.f32 %v441, %v447
        %v452 = vpack.c.bf16 %v449, %v448
        %v453 = vpack.c.bf16 %v451, %v450
        %456 = vrot.lane.b32.xlu0 %v442, 112
        %v457 = vpop.permute.xlu0 %456
        %458 = vrot.lane.b32.xlu0 %v443, 112
        %v459 = vpop.permute.xlu0 %458
        %v461 = vsel %vm232, %v457, 0
        %v464 = vsel %vm232, %v459, 0
        %466 = vmatprep.subr.bf16.mxu0 0
        %467 = vmatpush1.bf16.msra.mxu0 %v230
        %468 = vmatprep.subr.bf16.mxu0 0
        %469 = vmatpush1.bf16.msra.mxu0 0
        %470 = vmatprep.subr.bf16.mxu0 0
        %471 = vmatpush1.bf16.msra.mxu0 0
        %472 = vmatprep.subr.bf16.mxu0 0
        %473 = vmatpush1.bf16.msra.mxu0 0
        %474 = vmatprep.subr.bf16.mxu0 0
        %475 = vmatpush1.bf16.msra.mxu0 0
        %476 = vmatprep.subr.bf16.mxu0 0
        %477 = vmatpush1.bf16.msra.mxu0 0
        %478 = vmatprep.subr.bf16.mxu0 0
        %479 = vmatpush1.bf16.msra.mxu0 0
        %480 = vmatprep.subr.bf16.mxu0 0
        %481 = vmatpush1.bf16.msra.mxu0 0
        %482 = vmatprep.subr.bf16.mxu0 0
        %483 = vmatpush1.bf16.msra.mxu0 0
        %484 = vmatprep.subr.bf16.mxu0 0
        %485 = vmatpush1.bf16.msra.mxu0 0
        %486 = vmatprep.subr.bf16.mxu0 0
        %487 = vmatpush1.bf16.msra.mxu0 0
        %488 = vmatprep.subr.bf16.mxu0 0
        %489 = vmatpush1.bf16.msra.mxu0 0
        %490 = vmatprep.subr.bf16.mxu0 0
        %491 = vmatpush1.bf16.msra.mxu0 0
        %492 = vmatprep.subr.bf16.mxu0 0
        %493 = vmatpush1.bf16.msra.mxu0 0
        %494 = vmatprep.subr.bf16.mxu0 0
        %495 = vmatpush1.bf16.msra.mxu0 0
        %496 = vmatprep.subr.bf16.mxu0 0
        %497 = vmatpush1.bf16.msra.mxu0 0
        %498 = vmatprep.mubr.bf16.mxu0 0
        %499 = vmatmul.mubr.bf16.gmra.mrb[0].mxu0 %v461
        %v500 = vpop.f32.mrb[0].mxu0
        %v501 = vadd.f32 0.0, %v500
        %v502 = vpop.f32.mrb[0].mxu0
        %v503 = vpop.f32.mrb[0].mxu0
        %v504 = vadd.f32 0.0, %v503
        %v505 = vpop.f32.mrb[0].mxu0
        %506 = vmatprep.mubr.bf16.mxu0 0
        %507 = vmatmul.mubr.bf16.gmra.mrb[0].mxu0 %v464
        %v508 = vpop.f32.mrb[0].mxu0
        %v509 = vadd.f32 0.0, %v508
        %v510 = vpop.f32.mrb[0].mxu0
        %v511 = vpop.f32.mrb[0].mxu0
        %v512 = vadd.f32 0.0, %v511
        %v513 = vpop.f32.mrb[0].mxu0
        %514 = vdwg.mxu0
        %517 = vrot.lane.b32.xlu0 %v432, 112
        %v518 = vpop.permute.xlu0 %517
        %519 = vrot.lane.b32.xlu0 %v433, 112
        %v520 = vpop.permute.xlu0 %519
        %v522 = vsel %vm232, %v518, 0
        %v525 = vsel %vm232, %v520, 0
        %527 = vmatprep.subr.bf16.mxu0 0
        %528 = vmatpush1.bf16.msra.mxu0 %v230
        %529 = vmatprep.subr.bf16.mxu0 0
        %530 = vmatpush1.bf16.msra.mxu0 0
        %531 = vmatprep.subr.bf16.mxu0 0
        %532 = vmatpush1.bf16.msra.mxu0 0
        %533 = vmatprep.subr.bf16.mxu0 0
        %534 = vmatpush1.bf16.msra.mxu0 0
        %535 = vmatprep.subr.bf16.mxu0 0
        %536 = vmatpush1.bf16.msra.mxu0 0
        %537 = vmatprep.subr.bf16.mxu0 0
        %538 = vmatpush1.bf16.msra.mxu0 0
        %539 = vmatprep.subr.bf16.mxu0 0
        %540 = vmatpush1.bf16.msra.mxu0 0
        %541 = vmatprep.subr.bf16.mxu0 0
        %542 = vmatpush1.bf16.msra.mxu0 0
        %543 = vmatprep.subr.bf16.mxu0 0
        %544 = vmatpush1.bf16.msra.mxu0 0
        %545 = vmatprep.subr.bf16.mxu0 0
        %546 = vmatpush1.bf16.msra.mxu0 0
        %547 = vmatprep.subr.bf16.mxu0 0
        %548 = vmatpush1.bf16.msra.mxu0 0
        %549 = vmatprep.subr.bf16.mxu0 0
        %550 = vmatpush1.bf16.msra.mxu0 0
        %551 = vmatprep.subr.bf16.mxu0 0
        %552 = vmatpush1.bf16.msra.mxu0 0
        %553 = vmatprep.subr.bf16.mxu0 0
        %554 = vmatpush1.bf16.msra.mxu0 0
        %555 = vmatprep.subr.bf16.mxu0 0
        %556 = vmatpush1.bf16.msra.mxu0 0
        %557 = vmatprep.subr.bf16.mxu0 0
        %558 = vmatpush1.bf16.msra.mxu0 0
        %559 = vmatprep.mubr.bf16.mxu0 0
        %560 = vmatmul.mubr.bf16.gmra.mrb[0].mxu0 %v522
        %v561 = vpop.f32.mrb[0].mxu0
        %v562 = vadd.f32 %v501, %v561
        %v563 = vpop.f32.mrb[0].mxu0
        %v564 = vpop.f32.mrb[0].mxu0
        %v565 = vadd.f32 %v504, %v564
        %v566 = vpop.f32.mrb[0].mxu0
        %567 = vmatprep.mubr.bf16.mxu0 0
        %568 = vmatmul.mubr.bf16.gmra.mrb[0].mxu0 %v525
        %v569 = vpop.f32.mrb[0].mxu0
        %v570 = vadd.f32 %v509, %v569
        %v571 = vpop.f32.mrb[0].mxu0
        %v572 = vpop.f32.mrb[0].mxu0
        %v573 = vadd.f32 %v512, %v572
        %v574 = vpop.f32.mrb[0].mxu0
        %575 = vdwg.mxu0
        %578 = vrot.lane.b32.xlu0 %v452, 112
        %v579 = vpop.permute.xlu0 %578
        %580 = vrot.lane.b32.xlu0 %v453, 112
        %v581 = vpop.permute.xlu0 %580
        %v583 = vsel %vm232, %v579, 0
        %v586 = vsel %vm232, %v581, 0
        %588 = vmatprep.subr.bf16.mxu0 0
        %589 = vmatpush1.bf16.msra.mxu0 %v230
        %590 = vmatprep.subr.bf16.mxu0 0
        %591 = vmatpush1.bf16.msra.mxu0 0
        %592 = vmatprep.subr.bf16.mxu0 0
        %593 = vmatpush1.bf16.msra.mxu0 0
        %594 = vmatprep.subr.bf16.mxu0 0
        %595 = vmatpush1.bf16.msra.mxu0 0
        %596 = vmatprep.subr.bf16.mxu0 0
        %597 = vmatpush1.bf16.msra.mxu0 0
        %598 = vmatprep.subr.bf16.mxu0 0
        %599 = vmatpush1.bf16.msra.mxu0 0
        %600 = vmatprep.subr.bf16.mxu0 0
        %601 = vmatpush1.bf16.msra.mxu0 0
        %602 = vmatprep.subr.bf16.mxu0 0
        %603 = vmatpush1.bf16.msra.mxu0 0
        %604 = vmatprep.subr.bf16.mxu0 0
        %605 = vmatpush1.bf16.msra.mxu0 0
        %606 = vmatprep.subr.bf16.mxu0 0
        %607 = vmatpush1.bf16.msra.mxu0 0
        %608 = vmatprep.subr.bf16.mxu0 0
        %609 = vmatpush1.bf16.msra.mxu0 0
        %610 = vmatprep.subr.bf16.mxu0 0
        %611 = vmatpush1.bf16.msra.mxu0 0
        %612 = vmatprep.subr.bf16.mxu0 0
        %613 = vmatpush1.bf16.msra.mxu0 0
        %614 = vmatprep.subr.bf16.mxu0 0
        %615 = vmatpush1.bf16.msra.mxu0 0
        %616 = vmatprep.subr.bf16.mxu0 0
        %617 = vmatpush1.bf16.msra.mxu0 0
        %618 = vmatprep.subr.bf16.mxu0 0
        %619 = vmatpush1.bf16.msra.mxu0 0
        %620 = vmatprep.mubr.bf16.mxu0 0
        %621 = vmatmul.mubr.bf16.gmra.mrb[0].mxu0 %v583
        %v622 = vpop.f32.mrb[0].mxu0
        %v623 = vadd.f32 0.0, %v622
        %v624 = vpop.f32.mrb[0].mxu0
        %v625 = vpop.f32.mrb[0].mxu0
        %v626 = vadd.f32 0.0, %v625
        %v627 = vpop.f32.mrb[0].mxu0
        %628 = vmatprep.mubr.bf16.mxu0 0
        %629 = vmatmul.mubr.bf16.gmra.mrb[0].mxu0 %v586
        %v630 = vpop.f32.mrb[0].mxu0
        %v631 = vadd.f32 0.0, %v630
        %v632 = vpop.f32.mrb[0].mxu0
        %v633 = vpop.f32.mrb[0].mxu0
        %v634 = vadd.f32 0.0, %v633
        %v635 = vpop.f32.mrb[0].mxu0
        %636 = vdwg.mxu0
        %v637 = vadd.f32 %v562, %v623
        %v638 = vadd.f32 %v565, %v626
        %v639 = vadd.f32 %v570, %v631
        %v640 = vadd.f32 %v573, %v634
        %s641 = scalar_lea.vmem %s194, 64 [#allocation7]
        %642 = vst.msk [vmem:[%s641] sm:$0xff] %vm402, %v637
        %643 = vst.msk [vmem:[%s641 + $0x8] sm:$0xff] %vm402, %v638
        %644 = vst.msk [vmem:[%s641 + $0x10] sm:$0xff] %vm402, %v639
        %645 = vst.msk [vmem:[%s641 + $0x18] sm:$0xff] %vm402, %v640
        %650 = vrot.lane.b32.xlu0 %v637, 120
        %v651 = vpop.permute.xlu0 %650
        %652 = vrot.lane.b32.xlu0 %v638, 120
        %v653 = vpop.permute.xlu0 %652
        %654 = vrot.lane.b32.xlu0 %v639, 120
        %v655 = vpop.permute.xlu0 %654
        %656 = vrot.lane.b32.xlu0 %v640, 120
        %v657 = vpop.permute.xlu0 %656
        %s662 = scalar_lea.vmem %s194, 96 [#allocation7]
        %663 = vst.msk [vmem:[%s662] sm:$0xff] %vm402, %v651
        %664 = vst.msk [vmem:[%s662 + $0x8] sm:$0xff] %vm402, %v653
        %665 = vst.msk [vmem:[%s662 + $0x10] sm:$0xff] %vm402, %v655
        %666 = vst.msk [vmem:[%s662 + $0x18] sm:$0xff] %vm402, %v657
        %s667 = sand.u32 %s91, 1
        %s668 = scalar_lea.sflag [#allocation4], %s667
        %s669 = sand.u32 %s91, 1
        %s670 = smul.addr %s669, 128
        %s671 = scalar_lea.vmem [#allocation7], %s670
        // Predicated region
        $region37: #{tpu_custom_call.1} parent=27 // pred_check
          %p672 = pneg %p101
        $region38: #{tpu_custom_call.1} parent=27 // pred_check_branch
          %674 = sbr.rel (%p672) target = $region40
        $region39: #{tpu_custom_call.1} parent=27 // pred_region
          %s675 = smul.u32 4, %s25
          %s677 = ssub.s32 2048, 2048
          %678 = vsyncadd %s668, %s677
          %s679 = smul.addr %s24, 16
          %s680 = sadd.s32 %s675, %s679
          %s681 = smul.addr %s680, 128
          %s682 = scalar_lea.hbm %s2, %s681
          %s683 = sshll.u32 %s671, 4
          %s684 = int_to_ptr.vmem [resolvable:$true] %s683
          %689 = dma.vmem_to_hbm [thread:$0]  %s684, 2048, %s682, %s668, 128, 128, 8
        $region40: #{tpu_custom_call.1} parent=27 // pred_fallthru
          _
      $region28: #{tpu_custom_call.1} parent=5 // pred_fallthru
        _
      %p690 = scmp.le.s32.totalorder 2, %s15
      // Predicated region
      $region41: #{tpu_custom_call.1} parent=5 // pred_check
        %p691 = pneg %p690
      $region42: #{tpu_custom_call.1} parent=5 // pred_check_branch
        %693 = sbr.rel (%p691) target = $region44
      $region43: #{tpu_custom_call.1} parent=5 // pred_region
        %s694 = ssub.s32 %s15, 2
        // Predicated region
        $region45: #{tpu_custom_call.1} parent=43 // pred_check
          %p695 = pneg %p107
        $region46: #{tpu_custom_call.1} parent=43 // pred_check_branch
          %697 = sbr.rel (%p695) target = $region48
        $region47: #{tpu_custom_call.1} parent=43 // pred_region
          %s698 = sand.u32 %s92, 1
          %s699 = scalar_lea.sflag [#allocation4], %s698
          %s700 = sand.u32 %s92, 1
          %s701 = smul.addr %s700, 128
          %s702 = scalar_lea.vmem [#allocation7], %s701
          %703 = dma.done %s699, 2048
        $region48: #{tpu_custom_call.1} parent=43 // pred_fallthru
          _
      $region44: #{tpu_custom_call.1} parent=5 // pred_fallthru
        _
    $region6: #{tpu_custom_call.1} parent=1 // loop_footer
      %s19 = sadd.s32 1, %s15
    $region7: #{tpu_custom_call.1} parent=1 // loop_footer_branch
      %14 = sbr.rel target = $region3
    $region8: #{tpu_custom_call.1} parent=1 // loop_exit
      _
    %704 = vsyncpa [#allocation3], 1
    %s705 = scalar_lea.sflag [#allocation3], 1
    %706 = vsyncpa %s705, 1
    %707 = vsyncpa [#allocation6], 1
    %708 = vsyncpa [#allocation4], 1
    %s709 = scalar_lea.sflag [#allocation4], 1
    %710 = vsyncpa %s709, 1

// kernel: tpu_custom_call.1
$region0: #{tpu_custom_call.1}
  #allocation0 [shape = 'u32[]', space=smem, size = 0x4, offset = 0x4, fixed_abs, tag = 'smem constant byte address 0x4 - core index']
  #allocation1 [shape = 'u32[144,128]{1,0:T(1,128)}', space=vmem, size = 0x12000, scoped, tag = 'internal scratch']
  %s0 = inlined_call_operand.vmem [shape: f32[2,16,8,8], index: 0, kind: input, shape index: {}]
  %s1 = inlined_call_operand.hbm [shape: f32[2,8,8,16], index: 1, kind: output, shape index: {}]
  %s2 = sld [smem:[#allocation0]]
  $region37: #{tpu_custom_call.1} parent=0
    _
  %s4 = ssub.s32 1, %s2
  %s5 = scalar_select 0, %s4, %s2
  $region1: #{tpu_custom_call.1} parent=0
    #allocation2 [shape = 'u8[8192]{0}', space=vmem, size = 0x2000, scoped, tag = 'output window, operand 0']
    #allocation3 [shape = 's32[2]{0}', space=sflag, size = 0x8, scoped, tag = 'scoped memory for tpu_custom_call.1']
    %6 = vsyncpa [#allocation3], 0
    %s7 = scalar_lea.sflag [#allocation3], 1
    %8 = vsyncpa %s7, 0
    loop: start=0, step=1, limit=18
    $region2: #{tpu_custom_call.1} parent=1 // loop_pre_header
      _
    $region3: #{tpu_custom_call.1} parent=1 // loop_header
      %s10 = sphi 0, %s14
      %p11 = scmp.ge.s32.totalorder %s10, 18
      %s17 = sphi 0, %s29
      %s18 = sphi 0, %s25
      %s19 = sphi 0, %s17
      %s20 = sphi 0, %s18
      %s21 = sphi 0, %s19
      %s22 = sphi 0, %s20
      %s34 = sphi 0, %s36
      %s37 = sphi 0, %s34
      %s38 = sphi 0, %s37
      %s54 = sphi 0, %s38
      %s62 = sphi 0, %s64
      %s65 = sphi 0, %s62
      %s66 = sphi 0, %s65
      %s82 = sphi 0, %s66
    $region4: #{tpu_custom_call.1} parent=1 // loop_header_branch
      %13 = sbr.rel (%p11) target = $region8
    $region5: #{tpu_custom_call.1} parent=1 // loop_body
      %s15 = ssub.s32 %s10, 1
      %s16 = ssub.s32 %s10, 2
      %s23 = sadd.s32 1, %s18
      %p24 = scmp.ge.s32.totalorder %s23, 8
      %s25 = scalar_select %p24, 0, %s23
      %s26 = sadd.s32 1, %s17
      %s27 = scalar_select %p24, %s26, %s17
      %p28 = scmp.ge.s32.totalorder %s27, 2
      %s29 = scalar_select %p28, 0, %s27
      %s30 = ssub.s32 %s17, %s29
      %s31 = ssub.s32 %s18, %s25
      %s32 = sor.u32 %s30, %s31
      %p33 = scmp.eq.s32.totalorder %s32, 0
      %s35 = sadd.s32 %s34, 1
      %s36 = scalar_select %p33, %s34, %s35
      %p39 = pneg %p33
      %p40 = scmp.eq.s32.totalorder %s10, 15
      %p41 = por %p39, %p40
      %p42 = scmp.ne.s32.totalorder %s34, %s37
      %p43 = scmp.eq.s32.totalorder %s10, 0
      %p44 = por %p42, %p43
      %p45 = scmp.ne.s32.totalorder %s34, %s37
      %p46 = scmp.eq.s32.totalorder %s15, 15
      %p47 = por %p45, %p46
      %p48 = scmp.ne.s32.totalorder %s37, %s38
      %p49 = scmp.eq.s32.totalorder %s15, 0
      %p50 = por %p48, %p49
      %p51 = scmp.ne.s32.totalorder %s37, %s38
      %p52 = scmp.eq.s32.totalorder %s16, 15
      %p53 = por %p51, %p52
      %p55 = scmp.ne.s32.totalorder %s38, %s54
      %p56 = scmp.eq.s32.totalorder %s16, 0
      %p57 = por %p55, %p56
      %s58 = ssub.s32 %s17, %s29
      %s59 = ssub.s32 %s18, %s25
      %s60 = sor.u32 %s58, %s59
      %p61 = scmp.eq.s32.totalorder %s60, 0
      %s63 = sadd.s32 %s62, 1
      %s64 = scalar_select %p61, %s62, %s63
      %p67 = pneg %p61
      %p68 = scmp.eq.s32.totalorder %s10, 15
      %p69 = por %p67, %p68
      %p70 = scmp.ne.s32.totalorder %s62, %s65
      %p71 = scmp.eq.s32.totalorder %s10, 0
      %p72 = por %p70, %p71
      %p73 = scmp.ne.s32.totalorder %s62, %s65
      %p74 = scmp.eq.s32.totalorder %s15, 15
      %p75 = por %p73, %p74
      %p76 = scmp.ne.s32.totalorder %s65, %s66
      %p77 = scmp.eq.s32.totalorder %s15, 0
      %p78 = por %p76, %p77
      %p79 = scmp.ne.s32.totalorder %s65, %s66
      %p80 = scmp.eq.s32.totalorder %s16, 15
      %p81 = por %p79, %p80
      %p83 = scmp.ne.s32.totalorder %s66, %s82
      %p84 = scmp.eq.s32.totalorder %s16, 0
      %p85 = por %p83, %p84
      %p86 = scmp.le.s32.totalorder 1, %s10
      %p87 = scmp.lt.s32.totalorder %s10, 17
      %p88 = pnand %p86, %p87
      %p89 = pneg %p88
      // Predicated region
      $region9: #{tpu_custom_call.1} parent=5 // pred_check
        _
      $region10: #{tpu_custom_call.1} parent=5 // pred_check_branch
        %91 = sbr.rel (%p88) target = $region12
      $region11: #{tpu_custom_call.1} parent=5 // pred_region
        %s92 = ssub.s32 %s10, 1
      $region12: #{tpu_custom_call.1} parent=5 // pred_fallthru
        _
      %p93 = scmp.lt.s32.totalorder %s10, 16
      // Predicated region
      $region13: #{tpu_custom_call.1} parent=5 // pred_check
        %p94 = pneg %p93
      $region14: #{tpu_custom_call.1} parent=5 // pred_check_branch
        %96 = sbr.rel (%p94) target = $region16
      $region15: #{tpu_custom_call.1} parent=5 // pred_region
        // Predicated region
        $region17: #{tpu_custom_call.1} parent=15 // pred_check
          %p97 = pneg %p44
        $region18: #{tpu_custom_call.1} parent=15 // pred_check_branch
          %99 = sbr.rel (%p97) target = $region20
        $region19: #{tpu_custom_call.1} parent=15 // pred_region
          %s100 = smul.u32 2, %s18
          %p101 = scmp.lt.s32.totalorder %s17, 1
          %s102 = scalar_select %p101, %s17, 1
          %p103 = scmp.lt.s32.totalorder %s100, 15
          %s104 = scalar_select %p103, %s100, 15
          %s105 = smul.addr %s102, 16
          %s106 = sadd.s32 %s104, %s105
          %s107 = smul.addr %s106, 8
          %s108 = scalar_lea.vmem %s0, %s107
          %s109 = smul.u32 2, %s18
        $region20: #{tpu_custom_call.1} parent=15 // pred_fallthru
          _
      $region16: #{tpu_custom_call.1} parent=5 // pred_fallthru
        _
      %p110 = scmp.le.s32.totalorder 1, %s10
      %p111 = scmp.lt.s32.totalorder %s10, 17
      %p112 = pnand %p110, %p111
      %p113 = pneg %p112
      // Predicated region
      $region21: #{tpu_custom_call.1} parent=5 // pred_check
        _
      $region22: #{tpu_custom_call.1} parent=5 // pred_check_branch
        %115 = sbr.rel (%p112) target = $region24
      $region23: #{tpu_custom_call.1} parent=5 // pred_region
        %s116 = ssub.s32 %s10, 1
        %s117 = smul.u32 2, %s20
        %p118 = scmp.lt.s32.totalorder %s19, 1
        %s119 = scalar_select %p118, %s19, 1
        %p120 = scmp.lt.s32.totalorder %s117, 15
        %s121 = scalar_select %p120, %s117, 15
        %s122 = smul.addr %s119, 16
        %s123 = sadd.s32 %s121, %s122
        %s124 = smul.addr %s123, 8
        %s125 = scalar_lea.vmem %s0, %s124
        %p126 = pneg %p50
        %p127 = pneg %p47
        %p128 = pneg %p78
        %p129 = pneg %p75
        %s130 = sand.u32 %s65, 1
        %s131 = scalar_lea.sflag [#allocation3], %s130
        %s132 = sand.u32 %s65, 1
        %s133 = smul.addr %s132, 8
        %s134 = scalar_lea.vmem [#allocation2], %s133
        %s135 = smul.u32 2, %s20
        %p136 = scmp.lt.s32.totalorder %s19, 1
        %s137 = scalar_select %p136, %s19, 1
        %p138 = scmp.lt.s32.totalorder %s135, 15
        %s139 = scalar_select %p138, %s135, 15
        %s140 = smul.addr %s137, 16
        %s141 = sadd.s32 %s139, %s140
        %s142 = smul.addr %s141, 8
        %s143 = scalar_lea.vmem %s0, %s142
        %s144 = smul.u32 2, %s20
        %v145 = vld [vmem:[%s143] sm:$0xff]
        %vm146 = vcmask 64512
        %147 = vst.msk [vmem:[%s134] sm:$0xff] %vm146, %v145
        %s148 = scalar_lea.vmem %s143, 8
        %v149 = vld [vmem:[%s148] sm:$0xff]
        %151 = vrot.lane.b32.xlu0 %v149, 8
        %v152 = vpop.permute.xlu0 %151
        %vm154 = vcmask 130112
        %155 = vst.msk [vmem:[%s134] sm:$0xff] %vm154, %v152
        %s156 = sand.u32 %s65, 1
        %s157 = scalar_lea.sflag [#allocation3], %s156
        %s158 = sand.u32 %s65, 1
        %s159 = smul.addr %s158, 8
        %s160 = scalar_lea.vmem [#allocation2], %s159
        // Predicated region
        $region25: #{tpu_custom_call.1} parent=23 // pred_check
          %p161 = pneg %p75
        $region26: #{tpu_custom_call.1} parent=23 // pred_check_branch
          %163 = sbr.rel (%p161) target = $region28
        $region27: #{tpu_custom_call.1} parent=23 // pred_region
          %s165 = ssub.s32 128, 128
          %166 = vsyncadd %s157, %s165
          %s167 = smul.addr %s19, 8
          %s168 = sadd.s32 %s20, %s167
          %s169 = smul.addr %s168, 128
          %s170 = scalar_lea.hbm %s1, %s169
          %s172 = sshll.u32 %s160, 4
          %s173 = int_to_ptr.vmem [resolvable:$true] %s172
          %175 = dma.vmem_to_hbm [thread:$0]  %s173, 128, %s170, %s157
        $region28: #{tpu_custom_call.1} parent=23 // pred_fallthru
          _
      $region24: #{tpu_custom_call.1} parent=5 // pred_fallthru
        _
      %p176 = scmp.le.s32.totalorder 2, %s10
      // Predicated region
      $region29: #{tpu_custom_call.1} parent=5 // pred_check
        %p177 = pneg %p176
      $region30: #{tpu_custom_call.1} parent=5 // pred_check_branch
        %179 = sbr.rel (%p177) target = $region32
      $region31: #{tpu_custom_call.1} parent=5 // pred_region
        %s180 = ssub.s32 %s10, 2
        // Predicated region
        $region33: #{tpu_custom_call.1} parent=31 // pred_check
          %p181 = pneg %p81
        $region34: #{tpu_custom_call.1} parent=31 // pred_check_branch
          %183 = sbr.rel (%p181) target = $region36
        $region35: #{tpu_custom_call.1} parent=31 // pred_region
          %s184 = sand.u32 %s66, 1
          %s185 = scalar_lea.sflag [#allocation3], %s184
          %s186 = sand.u32 %s66, 1
          %s187 = smul.addr %s186, 8
          %s188 = scalar_lea.vmem [#allocation2], %s187
          %189 = dma.done %s185, 128
        $region36: #{tpu_custom_call.1} parent=31 // pred_fallthru
          _
      $region32: #{tpu_custom_call.1} parent=5 // pred_fallthru
        _
    $region6: #{tpu_custom_call.1} parent=1 // loop_footer
      %s14 = sadd.s32 1, %s10
    $region7: #{tpu_custom_call.1} parent=1 // loop_footer_branch
      %9 = sbr.rel target = $region3
    $region8: #{tpu_custom_call.1} parent=1 // loop_exit
      _
    %190 = vsyncpa [#allocation3], 1
    %s191 = scalar_lea.sflag [#allocation3], 1
    %192 = vsyncpa %s191, 1

</llo_original>
